<compile_context>
chip_gen: v6e
topology: v6e:2x2x1
jax: 0.10.0
libtpu: 0.0.40
codegen_flags: <defaults>
</compile_context>

<pallas_src>
import jax
import jax.numpy as jnp
from jax.experimental import pallas as pl
from jax.experimental.pallas import tpu as pltpu


def _round_up(n: int, m: int) -> int:
    return ((n + m - 1) // m) * m


def _vmem_capacity_bytes() -> int:
    try:
        return int(pltpu.get_tpu_info().vmem_capacity_bytes)
    except Exception:
        return 64 << 20  # conservative fallback (v7x per-core VMEM)


def _default_sublane_tile() -> int:
    # Size the double-buffered working set (input + output blocks) to ~1/4 of
    # the per-core VMEM:  2 * (3 + 1) * TS * 128 * 4 B  =  4096 B * TS.
    #   v5e/v6e (128 MiB): TS = 8192  -> 16 MiB of HBM traffic per grid step
    #   v7x     ( 64 MiB): TS = 4096  ->  8 MiB per grid step
    budget = _vmem_capacity_bytes() // 4
    return max(8, (budget // 4096) // 8 * 8)


def _dimension_semantics(grid_n: int):
    # v7x has two TensorCores per chip: shard the batch grid across both.
    # Single-TC chips (v5e / v6e) use plain PARALLEL.
    if grid_n > 1:
        try:
            name = str(getattr(pltpu.get_tpu_info(), "chip_version", "")).lower()
            if "7" in name:
                return (pltpu.CORE_PARALLEL,)
        except Exception:
            pass
    return (pltpu.PARALLEL,)


def _mlp_kernel(w_ref, xt_ref, o_ref):
    # Eight weight scalars from SMEM (broadcast onto VPU lanes, shared by
    # both layers).
    a00, a01, a02 = w_ref[0], w_ref[1], w_ref[2]   # linear1.weight row 0
    a10, a11, a12 = w_ref[3], w_ref[4], w_ref[5]   # linear1.weight row 1
    b0, b1 = w_ref[6], w_ref[7]                    # linear2.weight

    # Feature planes loaded directly from the ref: each is a dense (TS, 128)
    # slab (full 8x128 vregs, unmasked loads).
    x0 = xt_ref[0]
    x1 = xt_ref[1]
    x2 = xt_ref[2]

    # Layer 1 + ReLU: h_j = relu( sum_k W1[j,k] * x_k )
    h0 = jnp.maximum(a00 * x0 + a01 * x1 + a02 * x2, 0.0)
    h1 = jnp.maximum(a10 * x0 + a11 * x1 + a12 * x2, 0.0)

    # Layer 2 + ReLU, dense (TS, 128) store.
    o_ref[...] = jnp.maximum(b0 * h0 + b1 * h1, 0.0).astype(o_ref.dtype)


def super_min_model_nonlinear(x, w1, w2, *, max_sublane_tile=None):
    """x: (B, 3) f32; w1: (2, 3) = linear1.weight; w2: (1, 2) = linear2.weight.
    Returns (B, 1) f32, matching the PyTorch forward (bias-free linears)."""
    B = x.shape[0]
    assert x.shape[1] == 3 and w1.shape == (2, 3) and w2.shape == (1, 2)
    x = x.astype(jnp.float32)

    # Pad the batch only to a lane multiple (128), never to the tile size.
    b_pad = _round_up(max(B, 1), 128)
    S = b_pad // 128

    ts_cap = _default_sublane_tile()
    if max_sublane_tile is not None:
        ts_cap = max(8, (int(max_sublane_tile) // 8) * 8)

    if S <= ts_cap:
        ts, grid_n = S, 1                       # single step covers everything
    else:
        ts, grid_n = ts_cap, pl.cdiv(S, ts_cap)  # partial last block is masked

    # Batch-on-(sublane, lane) layout: (B,3) -> (3, S, 128).
    # TODO(synk): this transpose+pad is one extra HBM copy of x; a producer
    # that already emits the (3, S, 128) layout would remove it.
    xt = jnp.transpose(x)                        # (3, B)
    if b_pad != B:
        xt = jnp.pad(xt, ((0, 0), (0, b_pad - B)))
    xt = xt.reshape(3, S, 128)

    # Flatten the 8 weight scalars into one 1-D SMEM array.
    w = jnp.concatenate([w1.reshape(-1), w2.reshape(-1)]).astype(jnp.float32)

    # Double-buffered working set for the chosen tile, plus headroom.
    work_bytes = 2 * (3 + 1) * ts * 128 * 4
    vmem_limit = int(min(_vmem_capacity_bytes(),
                         max(32 << 20, work_bytes + (8 << 20))))

    out = pl.pallas_call(
        _mlp_kernel,
        out_shape=jax.ShapeDtypeStruct((S, 128), jnp.float32),
        grid=(grid_n,),
        in_specs=[
            pl.BlockSpec(memory_space=pltpu.MemorySpace.SMEM),   # (8,) weights
            pl.BlockSpec((3, ts, 128), lambda i: (0, i, 0)),     # x^T slab
        ],
        out_specs=pl.BlockSpec((ts, 128), lambda i: (i, 0)),     # dense output
        compiler_params=pltpu.CompilerParams(
            dimension_semantics=_dimension_semantics(grid_n),
            vmem_limit_bytes=vmem_limit,
        ),
    )(w, xt)

    return out.reshape(b_pad)[:B].reshape(B, 1)


if __name__ == "__main__":
    # Deterministic parameters exactly as in the PyTorch module's __init__.
    w1 = jnp.array([[2.0, 2.0, 2.0],
                    [1.0, 1.0, 1.0]], dtype=jnp.float32)   # linear1.weight (2, 3)
    w2 = jnp.array([[1.0, -1.0]], dtype=jnp.float32)       # linear2.weight (1, 2)

    def ref_fn(x):
        return jnp.maximum(jnp.maximum(x @ w1.T, 0.0) @ w2.T, 0.0)

    # 1) Small batch (the module's intended use).
    x = jax.random.normal(jax.random.PRNGKey(0), (8, 3), dtype=jnp.float32)
    out = jax.block_until_ready(super_min_model_nonlinear(x, w1, w2))
    assert out.shape == (8, 1)
    assert jnp.allclose(out, ref_fn(x), atol=1e-6), "small-batch mismatch"

    # 2) Larger batch: exercises 128-padding (single grid step).
    x_big = jax.random.normal(jax.random.PRNGKey(1), (1200, 3), dtype=jnp.float32)
    out_big = jax.block_until_ready(super_min_model_nonlinear(x_big, w1, w2))
    assert out_big.shape == (1200, 1)
    assert jnp.allclose(out_big, ref_fn(x_big), atol=1e-5), "large-batch mismatch"

    # 3) Forced small sublane tile: exercises a multi-step grid with a
    #    partial (masked) last block, without needing a ~1M-row batch.
    x_med = jax.random.normal(jax.random.PRNGKey(2), (2500, 3), dtype=jnp.float32)
    out_med = jax.block_until_ready(
        super_min_model_nonlinear(x_med, w1, w2, max_sublane_tile=8))
    assert out_med.shape == (2500, 1)
    assert jnp.allclose(out_med, ref_fn(x_med), atol=1e-5), "tiled-grid mismatch"

    print("KERNEL_OK")
</pallas_src>

<mosaic_0001>
module attributes {stable_mosaic.version = 11 : i64} {
  func.func @_mlp_kernel(%arg0: i32, %arg1: memref<8xf32, #tpu.memory_space<smem>>, %arg2: memref<3x1x128xf32, #tpu.memory_space<vmem>>, %arg3: memref<1x128xf32, #tpu.memory_space<vmem>>) attributes {dimension_semantics = [#tpu.dimension_semantics<parallel>], iteration_bounds = array<i64: 1>, scalar_prefetch = 0 : i64, scratch_operands = 0 : i64, tpu.core_type = #tpu.core_type<tc>, window_params = [{transform_indices = @transform_0, window_bounds = array<i64: 8>}, {transform_indices = @transform_1, window_bounds = array<i64: 3, 1, 128>}, {transform_indices = @transform_2, window_bounds = array<i64: 1, 128>}]} {
    %c0 = arith.constant 0 : index
    %0 = memref.load %arg1[%c0] : memref<8xf32, #tpu.memory_space<smem>>
    %c1 = arith.constant 1 : index
    %1 = memref.load %arg1[%c1] : memref<8xf32, #tpu.memory_space<smem>>
    %c2 = arith.constant 2 : index
    %2 = memref.load %arg1[%c2] : memref<8xf32, #tpu.memory_space<smem>>
    %c3 = arith.constant 3 : index
    %3 = memref.load %arg1[%c3] : memref<8xf32, #tpu.memory_space<smem>>
    %c4 = arith.constant 4 : index
    %4 = memref.load %arg1[%c4] : memref<8xf32, #tpu.memory_space<smem>>
    %c5 = arith.constant 5 : index
    %5 = memref.load %arg1[%c5] : memref<8xf32, #tpu.memory_space<smem>>
    %c6 = arith.constant 6 : index
    %6 = memref.load %arg1[%c6] : memref<8xf32, #tpu.memory_space<smem>>
    %c7 = arith.constant 7 : index
    %7 = memref.load %arg1[%c7] : memref<8xf32, #tpu.memory_space<smem>>
    %c0_0 = arith.constant 0 : index
    %c0_1 = arith.constant 0 : index
    %c0_2 = arith.constant 0 : index
    %8 = vector.load %arg2[%c0_0, %c0_1, %c0_2] : memref<3x1x128xf32, #tpu.memory_space<vmem>>, vector<1x1x128xf32>
    %9 = vector.shape_cast %8 : vector<1x1x128xf32> to vector<1x128xf32>
    %c1_3 = arith.constant 1 : index
    %c0_4 = arith.constant 0 : index
    %c0_5 = arith.constant 0 : index
    %10 = vector.load %arg2[%c1_3, %c0_4, %c0_5] : memref<3x1x128xf32, #tpu.memory_space<vmem>>, vector<1x1x128xf32>
    %11 = vector.shape_cast %10 : vector<1x1x128xf32> to vector<1x128xf32>
    %c2_6 = arith.constant 2 : index
    %c0_7 = arith.constant 0 : index
    %c0_8 = arith.constant 0 : index
    %12 = vector.load %arg2[%c2_6, %c0_7, %c0_8] : memref<3x1x128xf32, #tpu.memory_space<vmem>>, vector<1x1x128xf32>
    %13 = vector.shape_cast %12 : vector<1x1x128xf32> to vector<1x128xf32>
    %14 = vector.broadcast %0 : f32 to vector<1x128xf32>
    %15 = arith.mulf %14, %9 : vector<1x128xf32>
    %16 = vector.broadcast %1 : f32 to vector<1x128xf32>
    %17 = arith.mulf %16, %11 : vector<1x128xf32>
    %18 = arith.addf %15, %17 : vector<1x128xf32>
    %19 = vector.broadcast %2 : f32 to vector<1x128xf32>
    %20 = arith.mulf %19, %13 : vector<1x128xf32>
    %21 = arith.addf %18, %20 : vector<1x128xf32>
    %cst = arith.constant 0.000000e+00 : f32
    %22 = vector.broadcast %cst : f32 to vector<1x128xf32>
    %23 = arith.maximumf %21, %22 : vector<1x128xf32>
    %24 = vector.broadcast %3 : f32 to vector<1x128xf32>
    %25 = arith.mulf %24, %9 : vector<1x128xf32>
    %26 = vector.broadcast %4 : f32 to vector<1x128xf32>
    %27 = arith.mulf %26, %11 : vector<1x128xf32>
    %28 = arith.addf %25, %27 : vector<1x128xf32>
    %29 = vector.broadcast %5 : f32 to vector<1x128xf32>
    %30 = arith.mulf %29, %13 : vector<1x128xf32>
    %31 = arith.addf %28, %30 : vector<1x128xf32>
    %cst_9 = arith.constant 0.000000e+00 : f32
    %32 = vector.broadcast %cst_9 : f32 to vector<1x128xf32>
    %33 = arith.maximumf %31, %32 : vector<1x128xf32>
    %34 = vector.broadcast %6 : f32 to vector<1x128xf32>
    %35 = arith.mulf %34, %23 : vector<1x128xf32>
    %36 = vector.broadcast %7 : f32 to vector<1x128xf32>
    %37 = arith.mulf %36, %33 : vector<1x128xf32>
    %38 = arith.addf %35, %37 : vector<1x128xf32>
    %cst_10 = arith.constant 0.000000e+00 : f32
    %39 = vector.broadcast %cst_10 : f32 to vector<1x128xf32>
    %40 = arith.maximumf %38, %39 : vector<1x128xf32>
    %c0_11 = arith.constant 0 : index
    %c0_12 = arith.constant 0 : index
    %41 = vector.load %arg3[%c0_11, %c0_12] : memref<1x128xf32, #tpu.memory_space<vmem>>, vector<1x128xf32>
    tpu.vector_store %arg3[%c0_11, %c0_12], %40 {strides = array<i32>} : memref<1x128xf32, #tpu.memory_space<vmem>>, vector<1x128xf32>,
    return
  }
  func.func @transform_0(%arg0: i32) -> i32 {
    %c0_i32 = arith.constant 0 : i32
    %c0_i32_0 = arith.constant 0 : i32
    return %c0_i32 : i32
  }
  func.func @transform_1(%arg0: i32) -> (i32, i32, i32) {
    %c0_i32 = arith.constant 0 : i32
    %c0_i32_0 = arith.constant 0 : i32
    %c0_i32_1 = arith.constant 0 : i32
    return %c0_i32, %arg0, %c0_i32_0 : i32, i32, i32
  }
  func.func @transform_2(%arg0: i32) -> (i32, i32) {
    %c0_i32 = arith.constant 0 : i32
    %c0_i32_0 = arith.constant 0 : i32
    return %arg0, %c0_i32 : i32, i32
  }
}

</mosaic_0001>

<llo_original>
// kernel: tpu_custom_call.1
$region0: #{tpu_custom_call.1}
  #allocation0 [shape = 'u32[]', space=smem, size = 0x4, offset = 0x4, fixed_abs, tag = 'smem constant byte address 0x4 - core index']
  #allocation1 [shape = 'u32[144,128]{1,0:T(1,128)}', space=vmem, size = 0x12000, scoped, tag = 'internal scratch']
  %s0 = inlined_call_operand.hbm [shape: f32[8], index: 0, kind: input, shape index: {}]
  %s1 = inlined_call_operand.hbm [shape: f32[3,1,128], index: 1, kind: input, shape index: {}]
  %s2 = inlined_call_operand.hbm [shape: f32[1,128], index: 2, kind: output, shape index: {}]
  %s3 = sld [smem:[#allocation0]]
  $region26: #{tpu_custom_call.1} parent=0
    _
  %s5 = ssub.s32 1, %s3
  %s6 = scalar_select 0, %s5, %s3
  $region1: #{tpu_custom_call.1} parent=0
    #allocation2 [shape = 'u8[512]{0}', space=smem, size = 0x200, scoped, tag = 'input window, operand 0, single buffered']
    #allocation3 [shape = 's32[1]{0}', space=sflag, size = 0x4, scoped, tag = 'scoped memory for tpu_custom_call.1']
    #allocation4 [shape = 's32[1]{0}', space=sflag, size = 0x4, scoped, tag = 'scoped memory for tpu_custom_call.1']
    #allocation5 [shape = 's32[1]{0}', space=sflag, size = 0x4, scoped, tag = 'scoped memory for tpu_custom_call.1']
    #allocation6 [shape = 'u8[1536]{0}', space=vmem, size = 0x800, scoped, tag = 'input window, operand 1, single buffered']
    #allocation7 [shape = 'u8[512]{0}', space=vmem, size = 0x400, scoped, tag = 'output window, operand 0, single buffered']
    %7 = vsyncpa [#allocation5], 0
    %8 = vsyncpa [#allocation3], 0
    %9 = vsyncpa [#allocation4], 0
    // Predicated region
    $region2: #{tpu_custom_call.1} parent=1 // pred_check
      _
    $region3: #{tpu_custom_call.1} parent=1 // pred_check_branch
      %11 = sbr.rel (0) target = $region5
    $region4: #{tpu_custom_call.1} parent=1 // pred_region
      %s13 = ssub.s32 16, 16
      %14 = vsyncadd [#allocation5], %s13
      %17 = dma.hbm_to_smem %s0, 16, [#allocation2], [#allocation5]
    $region5: #{tpu_custom_call.1} parent=1 // pred_fallthru
      _
    // Predicated region
    $region6: #{tpu_custom_call.1} parent=1 // pred_check
      _
    $region7: #{tpu_custom_call.1} parent=1 // pred_check_branch
      %19 = sbr.rel (0) target = $region9
    $region8: #{tpu_custom_call.1} parent=1 // pred_region
      %s21 = ssub.s32 48, 48
      %22 = vsyncadd [#allocation3], %s21
      %s23 = sshll.u32 [#allocation6], 4
      %s24 = int_to_ptr.vmem [resolvable:$true] %s23
      %29 = dma.hbm_to_vmem [thread:$0]  %s1, 48, %s24, [#allocation3], 16, 16, 1
    $region9: #{tpu_custom_call.1} parent=1 // pred_fallthru
      _
    // Predicated region
    $region10: #{tpu_custom_call.1} parent=1 // pred_check
      _
    $region11: #{tpu_custom_call.1} parent=1 // pred_check_branch
      %31 = sbr.rel (0) target = $region13
    $region12: #{tpu_custom_call.1} parent=1 // pred_region
      %32 = dma.done [#allocation5], 16
    $region13: #{tpu_custom_call.1} parent=1 // pred_fallthru
      _
    // Predicated region
    $region14: #{tpu_custom_call.1} parent=1 // pred_check
      _
    $region15: #{tpu_custom_call.1} parent=1 // pred_check_branch
      %34 = sbr.rel (0) target = $region17
    $region16: #{tpu_custom_call.1} parent=1 // pred_region
      %35 = dma.done [#allocation3], 48
    $region17: #{tpu_custom_call.1} parent=1 // pred_fallthru
      _
    %36 = sfence
    %s37 = sld [smem:[#allocation2]]
    %s38 = sld [smem:[#allocation2 + $0x1]]
    %s39 = sld [smem:[#allocation2 + $0x2]]
    %s40 = sld [smem:[#allocation2 + $0x3]]
    %s41 = sld [smem:[#allocation2 + $0x4]]
    %s42 = sld [smem:[#allocation2 + $0x5]]
    %s43 = sld [smem:[#allocation2 + $0x6]]
    %s44 = sld [smem:[#allocation2 + $0x7]]
    %v45 = vld [vmem:[#allocation6] sm:$0x1]
    %s46 = scalar_lea.vmem [#allocation6], 1
    %v47 = vld [vmem:[%s46] sm:$0x1]
    %s48 = scalar_lea.vmem [#allocation6], 2
    %v49 = vld [vmem:[%s48] sm:$0x1]
    %v50 = vstv %s37
    %v51 = vmul.f32 %v50, %v45
    %v52 = vstv %s38
    %v53 = vmul.f32 %v52, %v47
    %v54 = vadd.f32 %v51, %v53
    %v55 = vstv %s39
    %v56 = vmul.f32 %v55, %v49
    %v57 = vadd.f32 %v54, %v56
    %v58 = vmax.f32 %v57, 0.0
    %v59 = vstv %s40
    %v60 = vmul.f32 %v59, %v45
    %v61 = vstv %s41
    %v62 = vmul.f32 %v61, %v47
    %v63 = vadd.f32 %v60, %v62
    %v64 = vstv %s42
    %v65 = vmul.f32 %v64, %v49
    %v66 = vadd.f32 %v63, %v65
    %v67 = vmax.f32 %v66, 0.0
    %v68 = vstv %s43
    %v69 = vmul.f32 %v68, %v58
    %v70 = vstv %s44
    %v71 = vmul.f32 %v70, %v67
    %v72 = vadd.f32 %v69, %v71
    %v73 = vmax.f32 %v72, 0.0
    %74 = vst [vmem:[#allocation7] sm:$0x1] %v73
    // Predicated region
    $region18: #{tpu_custom_call.1} parent=1 // pred_check
      _
    $region19: #{tpu_custom_call.1} parent=1 // pred_check_branch
      %76 = sbr.rel (0) target = $region21
    $region20: #{tpu_custom_call.1} parent=1 // pred_region
      %s78 = ssub.s32 16, 16
      %79 = vsyncadd [#allocation4], %s78
      %s81 = sshll.u32 [#allocation7], 4
      %s82 = int_to_ptr.vmem [resolvable:$true] %s81
      %84 = dma.vmem_to_hbm [thread:$0]  %s82, 16, %s2, [#allocation4]
    $region21: #{tpu_custom_call.1} parent=1 // pred_fallthru
      _
    // Predicated region
    $region22: #{tpu_custom_call.1} parent=1 // pred_check
      _
    $region23: #{tpu_custom_call.1} parent=1 // pred_check_branch
      %86 = sbr.rel (0) target = $region25
    $region24: #{tpu_custom_call.1} parent=1 // pred_region
      %87 = dma.done [#allocation4], 16
    $region25: #{tpu_custom_call.1} parent=1 // pred_fallthru
      _
    %88 = vsyncpa [#allocation3], 1
    %89 = vsyncpa [#allocation4], 1
    %90 = vsyncpa [#allocation5], 1

</llo_original>
